<compile_context>
chip_gen: v7x
topology: tpu7x:2x2x1
jax: 0.10.0
libtpu: 0.0.40
codegen_flags: <defaults>
</compile_context>

<pallas_src>
import jax
import jax.numpy as jnp
from jax.experimental import pallas as pl
from jax.experimental.pallas import tpu as pltpu


def _cdiv(a, b):
    return -(-a // b)


def _divisors(n):
    return [d for d in range(1, n + 1) if n % d == 0]


def _plan(N, S, Cin, Cout, x_itemsize, w_itemsize, target_bytes=4 << 20):
    """Pick (nb, ts, chunk, vmem_limit).

    nb    : batch rows per block (only >1 when spatial alone can't reach the
            per-step byte target).
    ts    : spatial tile (lanes), multiple of 128 (and of `chunk`).
    chunk : in-kernel lane sub-chunk width (bounds f32 intermediates).
    """
    try:
        vmem_cap = int(pltpu.get_tpu_info().vmem_capacity_bytes)
    except Exception:
        vmem_cap = 64 << 20                      # assume smallest (v7x per-TC)
    # Cap at 64 MiB: a per-chip (128 MiB) reading must never over-commit one
    # v7x TensorCore when the parallel grid is sharded across both TCs.
    vmem_limit = min((vmem_cap * 3) // 4, 64 << 20)
    budget = (vmem_limit * 3) // 4               # headroom for compiler scratch

    # Resident (non-lane-scaling) VMEM: double-buffered weight block, BN
    # vectors, plus an allowance for the per-sub-chunk f32 intermediates
    # (BN output h, its matmul-dtype cast, the f32 accumulator) at <=1k lanes.
    fixed = 2 * Cout * Cin * w_itemsize + 4 * Cin * 4
    fixed += (Cin * (4 + w_itemsize) + Cout * 4) * 1024

    s_round = _cdiv(S, 128) * 128
    lane_bytes = (Cin + Cout) * x_itemsize       # in + out bytes per lane/row

    nb, ts = 1, 128
    for nb_c in _divisors(N):
        per_lane = 2 * nb_c * lane_bytes         # double-buffered x + out
        ts_vmem = ((budget - fixed) // per_lane) // 128 * 128
        if ts_vmem < 128:
            break                                # growing nb only hurts
        ts_tgt = _cdiv(_cdiv(target_bytes, nb_c * lane_bytes), 128) * 128
        nb, ts = nb_c, max(128, min(ts_tgt, ts_vmem, s_round))
        if ts < s_round or nb * lane_bytes * ts >= target_bytes:
            break                                # byte target met / VMEM-bound

    # v7x megacore: a single-step grid would leave one TensorCore idle.
    if (N // nb) * _cdiv(S, ts) == 1 and ts > 128:
        ts = max(128, ((ts // 2) // 128) * 128)

    # Lane sub-chunking: >=512-lane chunks, at most 16 chunks per tile so the
    # static unroll stays bounded while intermediates stay a few vregs wide.
    if ts <= 512:
        chunk = ts
    else:
        ts = (ts // 512) * 512
        chunk = 512 * _cdiv(ts // 512, 16)
        ts = (ts // chunk) * chunk
    return int(nb), int(ts), int(chunk), int(vmem_limit)


def _make_kernel(nb, cin, ts, chunk, use_vpu):
    n_chunks = ts // chunk

    def kernel(x_ref, scale_ref, shift_ref, w_ref, o_ref):
        # x_ref:     (nb, Cin, ts)   activation block, spatial on lanes
        # scale_ref: (Cin, 1) f32    folded BN scale  (gamma / sqrt(var+eps))
        # shift_ref: (Cin, 1) f32    folded BN shift  (beta - mean * scale)
        # w_ref:     (Cout, Cin)     pointwise conv weight (matmul dtype)
        # o_ref:     (nb, Cout, ts)
        scale = scale_ref[...]
        shift = shift_ref[...]
        if use_vpu:
            wf = w_ref[...].astype(jnp.float32)
            w_cols = [wf[:, c:c + 1] for c in range(cin)]   # (Cout, 1) each

        # Static loops: constant lane offsets -> dense, unmasked loads/stores;
        # per-chunk intermediates stay small regardless of the big DMA block.
        for c in range(n_chunks):
            s0 = c * chunk
            for b in range(nb):
                xs = x_ref[b, :, s0:s0 + chunk].astype(jnp.float32)
                h = jnp.maximum(xs * scale + shift, 0.0)     # BN + ReLU (f32)
                if use_vpu:
                    # Tiny channel count: MXU would be >95% idle; ride the VPU.
                    acc = w_cols[0] * h[0:1, :]
                    for ci in range(1, cin):
                        acc = acc + w_cols[ci] * h[ci:ci + 1, :]
                else:
                    acc = jnp.dot(w_ref[...], h.astype(w_ref.dtype),
                                  preferred_element_type=jnp.float32)
                o_ref[b, :, s0:s0 + chunk] = acc.astype(o_ref.dtype)

    return kernel


def bn_ac_conv3d_pallas(x, gamma, beta, running_mean, running_var, weight,
                        *, eps=1e-5):
    """x: (N, Cin, D, H, W). weight: (Cout, Cin, 1, 1, 1). Returns NCDHW."""
    N, Cin, D, H, W = x.shape
    Cout = weight.shape[0]
    assert weight.shape[1:] == (Cin, 1, 1, 1), \
        "only the module's default 1x1x1 pointwise conv (groups=1, no bias)"
    S = D * H * W
    x_itemsize = jnp.dtype(x.dtype).itemsize

    # Matmul path selection.
    use_vpu = (Cin * Cout) <= 64
    if use_vpu:
        mm_dtype = jnp.float32
    elif x.dtype == jnp.bfloat16:
        mm_dtype = jnp.bfloat16
    elif x.dtype == jnp.float32 and Cin * Cout >= 256 * 256:
        mm_dtype = jnp.bfloat16          # channel-heavy: ~3x MXU throughput
    else:
        mm_dtype = jnp.float32
    w_itemsize = jnp.dtype(mm_dtype).itemsize

    nb, ts, chunk, vmem_limit = _plan(N, S, Cin, Cout, x_itemsize, w_itemsize)

    # Fold BN (eval mode) into per-channel scale/shift, kept in f32.
    scale = gamma.astype(jnp.float32) / jnp.sqrt(
        running_var.astype(jnp.float32) + eps)                     # (Cin,)
    shift = beta.astype(jnp.float32) - running_mean.astype(jnp.float32) * scale
    scale2 = scale.reshape(Cin, 1)
    shift2 = shift.reshape(Cin, 1)

    # Pointwise (1,1,1) conv == (Cout, Cin) matmul over channels.
    w2 = weight.reshape(Cout, Cin).astype(mm_dtype)

    # Free reshape (merges trailing dims; no transpose, no pad, no copy pass).
    x3 = x.reshape(N, Cin, S)

    grid = (N // nb, _cdiv(S, ts))
    kernel = _make_kernel(nb, Cin, ts, chunk, use_vpu)

    cost = pl.CostEstimate(
        flops=2 * N * Cin * Cout * S,
        transcendentals=0,
        bytes_accessed=N * (Cin + Cout) * S * x_itemsize
        + Cout * Cin * w_itemsize + 2 * Cin * 4,
    )

    out3 = pl.pallas_call(
        kernel,
        out_shape=jax.ShapeDtypeStruct((N, Cout, S), x.dtype),
        grid_spec=pltpu.PrefetchScalarGridSpec(
            num_scalar_prefetch=0,
            grid=grid,
            in_specs=[
                pl.BlockSpec((nb, Cin, ts), lambda n, s: (n, 0, s)),
                pl.BlockSpec((Cin, 1), lambda n, s: (0, 0)),
                pl.BlockSpec((Cin, 1), lambda n, s: (0, 0)),
                pl.BlockSpec((Cout, Cin), lambda n, s: (0, 0)),
            ],
            out_specs=pl.BlockSpec((nb, Cout, ts), lambda n, s: (n, 0, s)),
        ),
        compiler_params=pltpu.CompilerParams(
            dimension_semantics=("parallel", "parallel"),
            vmem_limit_bytes=vmem_limit,
        ),
        cost_estimate=cost,
    )(x3, scale2, shift2, w2)

    # Free reshape back (splits trailing dim) - output stays NCDHW.
    return out3.reshape(N, Cout, D, H, W)


def bn_ac_conv3d_ref(x, gamma, beta, running_mean, running_var, weight, *, eps=1e-5):
    """Pure-JAX reference (eval-mode BN -> ReLU -> 1x1x1 conv)."""
    c = x.shape[1]
    scale = (gamma / jnp.sqrt(running_var + eps)).reshape(1, c, 1, 1, 1)
    shift = (beta - running_mean * gamma / jnp.sqrt(running_var + eps)).reshape(1, c, 1, 1, 1)
    h = jnp.maximum(x * scale + shift, 0.0)
    w2 = weight.reshape(weight.shape[0], c)                        # (Cout, Cin)
    return jnp.einsum("ncdhw,oc->nodhw", h, w2)


# TODO(synk): general Conv3d kernel sizes / stride / padding / groups are not
# implemented; this covers the module's default 1x1x1 pointwise conv.
# TODO(synk): a Cout-tiled third grid axis (for weights too large to keep
# resident in v7x's 64 MiB VMEM) is not implemented.

if __name__ == "__main__":
    key = jax.random.PRNGKey(0)
    k_x, k_g, k_b, k_m, k_v, k_w = jax.random.split(key, 6)

    # Small shapes: N=2, C_in=4, D=4, H=8, W=8, C_out=8
    N, Cin, D, H, W = 2, 4, 4, 8, 8
    Cout = 8

    x = jax.random.normal(k_x, (N, Cin, D, H, W), dtype=jnp.float32)
    gamma = jax.random.normal(k_g, (Cin,), dtype=jnp.float32) * 0.1 + 1.0
    beta = jax.random.normal(k_b, (Cin,), dtype=jnp.float32) * 0.1
    running_mean = jax.random.normal(k_m, (Cin,), dtype=jnp.float32) * 0.1
    running_var = jax.random.uniform(k_v, (Cin,), dtype=jnp.float32,
                                     minval=0.5, maxval=1.5)
    # Conv3d weight for kernel=(1,1,1), groups=1, bias=False: (Cout, Cin, 1, 1, 1)
    weight = jax.random.normal(k_w, (Cout, Cin, 1, 1, 1), dtype=jnp.float32) * 0.1

    out = bn_ac_conv3d_pallas(x, gamma, beta, running_mean, running_var, weight)
    out = jax.block_until_ready(out)

    ref = bn_ac_conv3d_ref(x, gamma, beta, running_mean, running_var, weight)
    assert out.shape == (N, Cout, D, H, W)
    assert jnp.allclose(out, ref, atol=1e-4, rtol=1e-4), "mismatch vs reference"

    print("KERNEL_OK")
</pallas_src>

<mosaic_0001>
module attributes {stable_mosaic.version = 11 : i64} {
  func.func @kernel(%arg0: i32, %arg1: i32, %arg2: memref<2x4x128xf32, #tpu.memory_space<vmem>>, %arg3: memref<4x1xf32, #tpu.memory_space<vmem>>, %arg4: memref<4x1xf32, #tpu.memory_space<vmem>>, %arg5: memref<8x4xf32, #tpu.memory_space<vmem>>, %arg6: memref<2x8x128xf32, #tpu.memory_space<vmem>>) attributes {dimension_semantics = [#tpu.dimension_semantics<parallel>, #tpu.dimension_semantics<parallel>], iteration_bounds = array<i64: 1, 2>, scalar_prefetch = 0 : i64, scratch_operands = 0 : i64, tpu.core_type = #tpu.core_type<tc>, window_params = [{transform_indices = @transform_0, window_bounds = array<i64: 2, 4, 128>}, {pipeline_mode = #tpu.pipeline_mode<synchronous>, transform_indices = @transform_1, window_bounds = array<i64: 4, 1>}, {pipeline_mode = #tpu.pipeline_mode<synchronous>, transform_indices = @transform_2, window_bounds = array<i64: 4, 1>}, {pipeline_mode = #tpu.pipeline_mode<synchronous>, transform_indices = @transform_3, window_bounds = array<i64: 8, 4>}, {transform_indices = @transform_4, window_bounds = array<i64: 2, 8, 128>}]} {
    %c0 = arith.constant 0 : index
    %c0_0 = arith.constant 0 : index
    %0 = vector.load %arg3[%c0, %c0_0] : memref<4x1xf32, #tpu.memory_space<vmem>>, vector<4x1xf32>
    %c0_1 = arith.constant 0 : index
    %c0_2 = arith.constant 0 : index
    %1 = vector.load %arg4[%c0_1, %c0_2] : memref<4x1xf32, #tpu.memory_space<vmem>>, vector<4x1xf32>
    %c0_3 = arith.constant 0 : index
    %c0_4 = arith.constant 0 : index
    %2 = vector.load %arg5[%c0_3, %c0_4] : memref<8x4xf32, #tpu.memory_space<vmem>>, vector<8x4xf32>
    %3 = vector.extract_strided_slice %2 {offsets = [0, 0], sizes = [8, 1], strides = [1, 1]} : vector<8x4xf32> to vector<8x1xf32>
    %4 = vector.extract_strided_slice %2 {offsets = [0, 1], sizes = [8, 1], strides = [1, 1]} : vector<8x4xf32> to vector<8x1xf32>
    %5 = vector.extract_strided_slice %2 {offsets = [0, 2], sizes = [8, 1], strides = [1, 1]} : vector<8x4xf32> to vector<8x1xf32>
    %6 = vector.extract_strided_slice %2 {offsets = [0, 3], sizes = [8, 1], strides = [1, 1]} : vector<8x4xf32> to vector<8x1xf32>
    %c0_5 = arith.constant 0 : index
    %c0_6 = arith.constant 0 : index
    %c0_7 = arith.constant 0 : index
    %7 = vector.load %arg2[%c0_5, %c0_6, %c0_7] : memref<2x4x128xf32, #tpu.memory_space<vmem>>, vector<1x4x128xf32>
    %8 = vector.shape_cast %7 : vector<1x4x128xf32> to vector<4x128xf32>
    %9 = vector.broadcast %0 : vector<4x1xf32> to vector<4x128xf32>
    %10 = arith.mulf %8, %9 : vector<4x128xf32>
    %11 = vector.broadcast %1 : vector<4x1xf32> to vector<4x128xf32>
    %12 = arith.addf %10, %11 : vector<4x128xf32>
    %cst = arith.constant 0.000000e+00 : f32
    %13 = vector.broadcast %cst : f32 to vector<4x128xf32>
    %14 = arith.maximumf %12, %13 : vector<4x128xf32>
    %15 = vector.extract_strided_slice %14 {offsets = [0, 0], sizes = [1, 128], strides = [1, 1]} : vector<4x128xf32> to vector<1x128xf32>
    %16 = vector.broadcast %3 : vector<8x1xf32> to vector<8x128xf32>
    %17 = vector.broadcast %15 : vector<1x128xf32> to vector<8x128xf32>
    %18 = arith.mulf %16, %17 : vector<8x128xf32>
    %19 = vector.extract_strided_slice %14 {offsets = [1, 0], sizes = [1, 128], strides = [1, 1]} : vector<4x128xf32> to vector<1x128xf32>
    %20 = vector.broadcast %4 : vector<8x1xf32> to vector<8x128xf32>
    %21 = vector.broadcast %19 : vector<1x128xf32> to vector<8x128xf32>
    %22 = arith.mulf %20, %21 : vector<8x128xf32>
    %23 = arith.addf %18, %22 : vector<8x128xf32>
    %24 = vector.extract_strided_slice %14 {offsets = [2, 0], sizes = [1, 128], strides = [1, 1]} : vector<4x128xf32> to vector<1x128xf32>
    %25 = vector.broadcast %5 : vector<8x1xf32> to vector<8x128xf32>
    %26 = vector.broadcast %24 : vector<1x128xf32> to vector<8x128xf32>
    %27 = arith.mulf %25, %26 : vector<8x128xf32>
    %28 = arith.addf %23, %27 : vector<8x128xf32>
    %29 = vector.extract_strided_slice %14 {offsets = [3, 0], sizes = [1, 128], strides = [1, 1]} : vector<4x128xf32> to vector<1x128xf32>
    %30 = vector.broadcast %6 : vector<8x1xf32> to vector<8x128xf32>
    %31 = vector.broadcast %29 : vector<1x128xf32> to vector<8x128xf32>
    %32 = arith.mulf %30, %31 : vector<8x128xf32>
    %33 = arith.addf %28, %32 : vector<8x128xf32>
    %c0_8 = arith.constant 0 : index
    %c0_9 = arith.constant 0 : index
    %c0_10 = arith.constant 0 : index
    %34 = vector.load %arg6[%c0_8, %c0_9, %c0_10] : memref<2x8x128xf32, #tpu.memory_space<vmem>>, vector<1x8x128xf32>
    %35 = vector.shape_cast %34 : vector<1x8x128xf32> to vector<8x128xf32>
    %36 = vector.shape_cast %33 : vector<8x128xf32> to vector<1x8x128xf32>
    tpu.vector_store %arg6[%c0_8, %c0_9, %c0_10], %36 {strides = array<i32>} : memref<2x8x128xf32, #tpu.memory_space<vmem>>, vector<1x8x128xf32>,
    %c1 = arith.constant 1 : index
    %c0_11 = arith.constant 0 : index
    %c0_12 = arith.constant 0 : index
    %37 = vector.load %arg2[%c1, %c0_11, %c0_12] : memref<2x4x128xf32, #tpu.memory_space<vmem>>, vector<1x4x128xf32>
    %38 = vector.shape_cast %37 : vector<1x4x128xf32> to vector<4x128xf32>
    %39 = vector.broadcast %0 : vector<4x1xf32> to vector<4x128xf32>
    %40 = arith.mulf %38, %39 : vector<4x128xf32>
    %41 = vector.broadcast %1 : vector<4x1xf32> to vector<4x128xf32>
    %42 = arith.addf %40, %41 : vector<4x128xf32>
    %cst_13 = arith.constant 0.000000e+00 : f32
    %43 = vector.broadcast %cst_13 : f32 to vector<4x128xf32>
    %44 = arith.maximumf %42, %43 : vector<4x128xf32>
    %45 = vector.extract_strided_slice %44 {offsets = [0, 0], sizes = [1, 128], strides = [1, 1]} : vector<4x128xf32> to vector<1x128xf32>
    %46 = vector.broadcast %3 : vector<8x1xf32> to vector<8x128xf32>
    %47 = vector.broadcast %45 : vector<1x128xf32> to vector<8x128xf32>
    %48 = arith.mulf %46, %47 : vector<8x128xf32>
    %49 = vector.extract_strided_slice %44 {offsets = [1, 0], sizes = [1, 128], strides = [1, 1]} : vector<4x128xf32> to vector<1x128xf32>
    %50 = vector.broadcast %4 : vector<8x1xf32> to vector<8x128xf32>
    %51 = vector.broadcast %49 : vector<1x128xf32> to vector<8x128xf32>
    %52 = arith.mulf %50, %51 : vector<8x128xf32>
    %53 = arith.addf %48, %52 : vector<8x128xf32>
    %54 = vector.extract_strided_slice %44 {offsets = [2, 0], sizes = [1, 128], strides = [1, 1]} : vector<4x128xf32> to vector<1x128xf32>
    %55 = vector.broadcast %5 : vector<8x1xf32> to vector<8x128xf32>
    %56 = vector.broadcast %54 : vector<1x128xf32> to vector<8x128xf32>
    %57 = arith.mulf %55, %56 : vector<8x128xf32>
    %58 = arith.addf %53, %57 : vector<8x128xf32>
    %59 = vector.extract_strided_slice %44 {offsets = [3, 0], sizes = [1, 128], strides = [1, 1]} : vector<4x128xf32> to vector<1x128xf32>
    %60 = vector.broadcast %6 : vector<8x1xf32> to vector<8x128xf32>
    %61 = vector.broadcast %59 : vector<1x128xf32> to vector<8x128xf32>
    %62 = arith.mulf %60, %61 : vector<8x128xf32>
    %63 = arith.addf %58, %62 : vector<8x128xf32>
    %c1_14 = arith.constant 1 : index
    %c0_15 = arith.constant 0 : index
    %c0_16 = arith.constant 0 : index
    %64 = vector.load %arg6[%c1_14, %c0_15, %c0_16] : memref<2x8x128xf32, #tpu.memory_space<vmem>>, vector<1x8x128xf32>
    %65 = vector.shape_cast %64 : vector<1x8x128xf32> to vector<8x128xf32>
    %66 = vector.shape_cast %63 : vector<8x128xf32> to vector<1x8x128xf32>
    tpu.vector_store %arg6[%c1_14, %c0_15, %c0_16], %66 {strides = array<i32>} : memref<2x8x128xf32, #tpu.memory_space<vmem>>, vector<1x8x128xf32>,
    return
  }
  func.func @transform_0(%arg0: i32, %arg1: i32) -> (i32, i32, i32) {
    %c0_i32 = arith.constant 0 : i32
    %c0_i32_0 = arith.constant 0 : i32
    return %arg0, %c0_i32, %arg1 : i32, i32, i32
  }
  func.func @transform_1(%arg0: i32, %arg1: i32) -> (i32, i32) {
    %c0_i32 = arith.constant 0 : i32
    %c0_i32_0 = arith.constant 0 : i32
    %c0_i32_1 = arith.constant 0 : i32
    return %c0_i32, %c0_i32_0 : i32, i32
  }
  func.func @transform_2(%arg0: i32, %arg1: i32) -> (i32, i32) {
    %c0_i32 = arith.constant 0 : i32
    %c0_i32_0 = arith.constant 0 : i32
    %c0_i32_1 = arith.constant 0 : i32
    return %c0_i32, %c0_i32_0 : i32, i32
  }
  func.func @transform_3(%arg0: i32, %arg1: i32) -> (i32, i32) {
    %c0_i32 = arith.constant 0 : i32
    %c0_i32_0 = arith.constant 0 : i32
    %c0_i32_1 = arith.constant 0 : i32
    return %c0_i32, %c0_i32_0 : i32, i32
  }
  func.func @transform_4(%arg0: i32, %arg1: i32) -> (i32, i32, i32) {
    %c0_i32 = arith.constant 0 : i32
    %c0_i32_0 = arith.constant 0 : i32
    return %arg0, %c0_i32, %arg1 : i32, i32, i32
  }
}

</mosaic_0001>

<llo_original>
// kernel: tpu_custom_call.1
$region0: #{tpu_custom_call.1}
  #allocation0 [shape = 'u32[]', space=smem, size = 0x4, offset = 0x4, fixed_abs, tag = 'smem constant byte address 0x4 - core index']
  #allocation1 [shape = 'u32[144,128]{1,0:T(1,128)}', space=vmem, size = 0x12000, scoped, tag = 'internal scratch']
  %s0 = inlined_call_operand.vmem [shape: f32[2,4,256], index: 0, kind: input, shape index: {}]
  %s1 = inlined_call_operand.vmem [shape: f32[4,1], index: 1, kind: input, shape index: {}]
  %s2 = inlined_call_operand.vmem [shape: f32[4,1], index: 2, kind: input, shape index: {}]
  %s3 = inlined_call_operand.vmem [shape: f32[8,4], index: 3, kind: input, shape index: {}]
  %s4 = inlined_call_operand.hbm [shape: f32[2,8,256], index: 4, kind: output, shape index: {}]
  %s5 = sld [smem:[#allocation0]]
  $region90: #{tpu_custom_call.1} parent=0
    _
  %s7 = ssub.s32 1, %s5
  %s8 = scalar_select 0, %s7, %s5
  $region1: #{tpu_custom_call.1} parent=0
    #allocation2 [shape = 'u8[8192]{0}', space=vmem, size = 0x2000, scoped, tag = 'input window, operand 0']
    #allocation3 [shape = 'u8[16384]{0}', space=vmem, size = 0x4000, scoped, tag = 'output window, operand 0']
    #allocation4 [shape = 's32[2]{0}', space=sflag, size = 0x8, scoped, tag = 'scoped memory for tpu_custom_call.1']
    %9 = vsyncpa [#allocation4], 0
    %s10 = scalar_lea.sflag [#allocation4], 1
    %11 = vsyncpa %s10, 0
    loop: start=0, step=1, limit=4
    $region2: #{tpu_custom_call.1} parent=1 // loop_pre_header
      _
    $region3: #{tpu_custom_call.1} parent=1 // loop_header
      %s13 = sphi 0, %s17
      %p14 = scmp.ge.s32.totalorder %s13, 4
      %s20 = sphi 0, %s32
      %s21 = sphi 0, %s28
      %s22 = sphi 0, %s20
      %s23 = sphi 0, %s21
      %s24 = sphi 0, %s22
      %s25 = sphi 0, %s23
      %s37 = sphi 0, %s39
      %s40 = sphi 0, %s37
      %s41 = sphi 0, %s40
      %s57 = sphi 0, %s41
      %s61 = sphi 0, %s61
      %s63 = sphi 0, %s61
      %s64 = sphi 0, %s63
      %s78 = sphi 0, %s64
      %s82 = sphi 0, %s82
      %s84 = sphi 0, %s82
      %s85 = sphi 0, %s84
      %s99 = sphi 0, %s85
      %s103 = sphi 0, %s103
      %s105 = sphi 0, %s103
      %s106 = sphi 0, %s105
      %s120 = sphi 0, %s106
      %s128 = sphi 0, %s130
      %s131 = sphi 0, %s128
      %s132 = sphi 0, %s131
      %s148 = sphi 0, %s132
    $region4: #{tpu_custom_call.1} parent=1 // loop_header_branch
      %16 = sbr.rel (%p14) target = $region8
    $region5: #{tpu_custom_call.1} parent=1 // loop_body
      %s18 = ssub.s32 %s13, 1
      %s19 = ssub.s32 %s13, 2
      %s26 = sadd.s32 1, %s21
      %p27 = scmp.ge.s32.totalorder %s26, 2
      %s28 = scalar_select %p27, 0, %s26
      %s29 = sadd.s32 1, %s20
      %s30 = scalar_select %p27, %s29, %s20
      %p31 = scmp.ge.s32.totalorder %s30, 1
      %s32 = scalar_select %p31, 0, %s30
      %s33 = ssub.s32 %s20, %s32
      %s34 = ssub.s32 %s21, %s28
      %s35 = sor.u32 %s33, %s34
      %p36 = scmp.eq.s32.totalorder %s35, 0
      %s38 = sadd.s32 %s37, 1
      %s39 = scalar_select %p36, %s37, %s38
      %p42 = pneg %p36
      %p43 = scmp.eq.s32.totalorder %s13, 1
      %p44 = por %p42, %p43
      %p45 = scmp.ne.s32.totalorder %s37, %s40
      %p46 = scmp.eq.s32.totalorder %s13, 0
      %p47 = por %p45, %p46
      %p48 = scmp.ne.s32.totalorder %s37, %s40
      %p49 = scmp.eq.s32.totalorder %s18, 1
      %p50 = por %p48, %p49
      %p51 = scmp.ne.s32.totalorder %s40, %s41
      %p52 = scmp.eq.s32.totalorder %s18, 0
      %p53 = por %p51, %p52
      %p54 = scmp.ne.s32.totalorder %s40, %s41
      %p55 = scmp.eq.s32.totalorder %s19, 1
      %p56 = por %p54, %p55
      %p58 = scmp.ne.s32.totalorder %s41, %s57
      %p59 = scmp.eq.s32.totalorder %s19, 0
      %p60 = por %p58, %p59
      %s62 = sadd.s32 %s61, 1
      %p65 = scmp.eq.s32.totalorder %s13, 1
      %p66 = scmp.ne.s32.totalorder %s61, %s63
      %p67 = scmp.eq.s32.totalorder %s13, 0
      %p68 = por %p66, %p67
      %p69 = scmp.ne.s32.totalorder %s61, %s63
      %p70 = scmp.eq.s32.totalorder %s18, 1
      %p71 = por %p69, %p70
      %p72 = scmp.ne.s32.totalorder %s63, %s64
      %p73 = scmp.eq.s32.totalorder %s18, 0
      %p74 = por %p72, %p73
      %p75 = scmp.ne.s32.totalorder %s63, %s64
      %p76 = scmp.eq.s32.totalorder %s19, 1
      %p77 = por %p75, %p76
      %p79 = scmp.ne.s32.totalorder %s64, %s78
      %p80 = scmp.eq.s32.totalorder %s19, 0
      %p81 = por %p79, %p80
      %s83 = sadd.s32 %s82, 1
      %p86 = scmp.eq.s32.totalorder %s13, 1
      %p87 = scmp.ne.s32.totalorder %s82, %s84
      %p88 = scmp.eq.s32.totalorder %s13, 0
      %p89 = por %p87, %p88
      %p90 = scmp.ne.s32.totalorder %s82, %s84
      %p91 = scmp.eq.s32.totalorder %s18, 1
      %p92 = por %p90, %p91
      %p93 = scmp.ne.s32.totalorder %s84, %s85
      %p94 = scmp.eq.s32.totalorder %s18, 0
      %p95 = por %p93, %p94
      %p96 = scmp.ne.s32.totalorder %s84, %s85
      %p97 = scmp.eq.s32.totalorder %s19, 1
      %p98 = por %p96, %p97
      %p100 = scmp.ne.s32.totalorder %s85, %s99
      %p101 = scmp.eq.s32.totalorder %s19, 0
      %p102 = por %p100, %p101
      %s104 = sadd.s32 %s103, 1
      %p107 = scmp.eq.s32.totalorder %s13, 1
      %p108 = scmp.ne.s32.totalorder %s103, %s105
      %p109 = scmp.eq.s32.totalorder %s13, 0
      %p110 = por %p108, %p109
      %p111 = scmp.ne.s32.totalorder %s103, %s105
      %p112 = scmp.eq.s32.totalorder %s18, 1
      %p113 = por %p111, %p112
      %p114 = scmp.ne.s32.totalorder %s105, %s106
      %p115 = scmp.eq.s32.totalorder %s18, 0
      %p116 = por %p114, %p115
      %p117 = scmp.ne.s32.totalorder %s105, %s106
      %p118 = scmp.eq.s32.totalorder %s19, 1
      %p119 = por %p117, %p118
      %p121 = scmp.ne.s32.totalorder %s106, %s120
      %p122 = scmp.eq.s32.totalorder %s19, 0
      %p123 = por %p121, %p122
      %s124 = ssub.s32 %s20, %s32
      %s125 = ssub.s32 %s21, %s28
      %s126 = sor.u32 %s124, %s125
      %p127 = scmp.eq.s32.totalorder %s126, 0
      %s129 = sadd.s32 %s128, 1
      %s130 = scalar_select %p127, %s128, %s129
      %p133 = pneg %p127
      %p134 = scmp.eq.s32.totalorder %s13, 1
      %p135 = por %p133, %p134
      %p136 = scmp.ne.s32.totalorder %s128, %s131
      %p137 = scmp.eq.s32.totalorder %s13, 0
      %p138 = por %p136, %p137
      %p139 = scmp.ne.s32.totalorder %s128, %s131
      %p140 = scmp.eq.s32.totalorder %s18, 1
      %p141 = por %p139, %p140
      %p142 = scmp.ne.s32.totalorder %s131, %s132
      %p143 = scmp.eq.s32.totalorder %s18, 0
      %p144 = por %p142, %p143
      %p145 = scmp.ne.s32.totalorder %s131, %s132
      %p146 = scmp.eq.s32.totalorder %s19, 1
      %p147 = por %p145, %p146
      %p149 = scmp.ne.s32.totalorder %s132, %s148
      %p150 = scmp.eq.s32.totalorder %s19, 0
      %p151 = por %p149, %p150
      %p152 = scmp.le.s32.totalorder 1, %s13
      %p153 = scmp.lt.s32.totalorder %s13, 3
      %p154 = pnand %p152, %p153
      %p155 = pneg %p154
      // Predicated region
      $region9: #{tpu_custom_call.1} parent=5 // pred_check
        _
      $region10: #{tpu_custom_call.1} parent=5 // pred_check_branch
        %157 = sbr.rel (%p154) target = $region12
      $region11: #{tpu_custom_call.1} parent=5 // pred_region
        %s158 = ssub.s32 %s13, 1
        // Predicated region
        $region13: #{tpu_custom_call.1} parent=11 // pred_check
          %p159 = pneg %p74
        $region14: #{tpu_custom_call.1} parent=11 // pred_check_branch
          %161 = sbr.rel (%p159) target = $region16
        $region15: #{tpu_custom_call.1} parent=11 // pred_region
          _
        $region16: #{tpu_custom_call.1} parent=11 // pred_fallthru
          _
        // Predicated region
        $region17: #{tpu_custom_call.1} parent=11 // pred_check
          %p162 = pneg %p95
        $region18: #{tpu_custom_call.1} parent=11 // pred_check_branch
          %164 = sbr.rel (%p162) target = $region20
        $region19: #{tpu_custom_call.1} parent=11 // pred_region
          _
        $region20: #{tpu_custom_call.1} parent=11 // pred_fallthru
          _
        // Predicated region
        $region21: #{tpu_custom_call.1} parent=11 // pred_check
          %p165 = pneg %p116
        $region22: #{tpu_custom_call.1} parent=11 // pred_check_branch
          %167 = sbr.rel (%p165) target = $region24
        $region23: #{tpu_custom_call.1} parent=11 // pred_region
          _
        $region24: #{tpu_custom_call.1} parent=11 // pred_fallthru
          _
      $region12: #{tpu_custom_call.1} parent=5 // pred_fallthru
        _
      %p168 = scmp.lt.s32.totalorder %s13, 2
      // Predicated region
      $region25: #{tpu_custom_call.1} parent=5 // pred_check
        %p169 = pneg %p168
      $region26: #{tpu_custom_call.1} parent=5 // pred_check_branch
        %171 = sbr.rel (%p169) target = $region28
      $region27: #{tpu_custom_call.1} parent=5 // pred_region
        // Predicated region
        $region29: #{tpu_custom_call.1} parent=27 // pred_check
          %p172 = pneg %p47
        $region30: #{tpu_custom_call.1} parent=27 // pred_check_branch
          %174 = sbr.rel (%p172) target = $region32
        $region31: #{tpu_custom_call.1} parent=27 // pred_region
          %s175 = sand.u32 %s37, 1
          %s176 = sand.u32 %s37, 1
          %s177 = smul.addr %s176, 8
          %s178 = scalar_lea.vmem [#allocation2], %s177
          %s179 = smul.u32 2, %s20
          %s180 = smul.addr %s179, 2
          %s181 = sadd.s32 %s21, %s180
          %s182 = smul.addr %s181, 4
          %s183 = scalar_lea.vmem %s0, %s182
          // Predicated region
          $region33: #{tpu_custom_call.1} parent=31 // pred_check
            _
          $region34: #{tpu_custom_call.1} parent=31 // pred_check_branch
            %185 = sbr.rel (0) target = $region36
          $region35: #{tpu_custom_call.1} parent=31 // pred_region
            // Predicated region
            $region37: #{tpu_custom_call.1} parent=35 // pred_check
              _
            $region38: #{tpu_custom_call.1} parent=35 // pred_check_branch
              %187 = sbr.rel target = $region40
            $region39: #{tpu_custom_call.1} parent=35 // pred_region
              // Predicated region
              $region52: #{tpu_custom_call.1} parent=39 // pred_check
                _
              $region53: #{tpu_custom_call.1} parent=39 // pred_check_branch
                %204 = sbr.rel (0) target = $region55
              $region54: #{tpu_custom_call.1} parent=39 // pred_region
                loop: start=0, step=1, limit=1
                $region56: #{tpu_custom_call.1} parent=54 // loop_pre_header
                  _
                $region57: #{tpu_custom_call.1} parent=54 // loop_header
                  %s206 = sphi 0, %s210
                  %p207 = scmp.ge.s32.totalorder %s206, 1
                  %s211 = sphi %s183, %s183
                  %s212 = sphi %s178, %s178
                $region58: #{tpu_custom_call.1} parent=54 // loop_header_branch
                  %209 = sbr.rel (%p207) target = $region62
                $region59: #{tpu_custom_call.1} parent=54 // loop_body
                  _
                $region60: #{tpu_custom_call.1} parent=54 // loop_footer
                  %s210 = sadd.s32 1, %s206
                $region61: #{tpu_custom_call.1} parent=54 // loop_footer_branch
                  %205 = sbr.rel target = $region57
                $region62: #{tpu_custom_call.1} parent=54 // loop_exit
                  _
                loop: start=0, step=1, limit=1
                $region63: #{tpu_custom_call.1} parent=54 // loop_pre_header
                  _
                $region64: #{tpu_custom_call.1} parent=54 // loop_header
                  %s215 = sphi 0, %s219
                  %p216 = scmp.ge.s32.totalorder %s215, 1
                  %s220 = sphi %s183, %s183
                  %s221 = sphi %s178, %s178
                $region65: #{tpu_custom_call.1} parent=54 // loop_header_branch
                  %218 = sbr.rel (%p216) target = $region69
                $region66: #{tpu_custom_call.1} parent=54 // loop_body
                  %v222 = vld [vmem:[%s220] sm:$0xf]
                  %223 = vst [vmem:[%s221] sm:$0xf] %v222
                  %v224 = vld [vmem:[%s220 + $0x8] sm:$0xf]
                  %225 = vst [vmem:[%s221 + $0x4] sm:$0xf] %v224
                $region67: #{tpu_custom_call.1} parent=54 // loop_footer
                  %s219 = sadd.s32 1, %s215
                $region68: #{tpu_custom_call.1} parent=54 // loop_footer_branch
                  %214 = sbr.rel target = $region64
                $region69: #{tpu_custom_call.1} parent=54 // loop_exit
                  _
              $region55: #{tpu_custom_call.1} parent=39 // pred_fallthru
                _
            $region40: #{tpu_custom_call.1} parent=35 // pred_fallthru
              _
            // Predicated region
            $region41: #{tpu_custom_call.1} parent=35 // pred_check
              _
            $region42: #{tpu_custom_call.1} parent=35 // pred_check_branch
              %189 = sbr.rel (0) target = $region44
            $region43: #{tpu_custom_call.1} parent=35 // pred_region
              loop: start=0, step=1, limit=1
              $region45: #{tpu_custom_call.1} parent=43 // loop_pre_header
                _
              $region46: #{tpu_custom_call.1} parent=43 // loop_header
                %s192 = sphi 0, %s196
                %p193 = scmp.ge.s32.totalorder %s192, 1
                %s197 = sphi %s183, %s183
                %s198 = sphi %s178, %s178
              $region47: #{tpu_custom_call.1} parent=43 // loop_header_branch
                %195 = sbr.rel (%p193) target = $region51
              $region48: #{tpu_custom_call.1} parent=43 // loop_body
                %v199 = vld [vmem:[%s197] sm:$0xf]
                %200 = vst [vmem:[%s198] sm:$0xf] %v199
                %v201 = vld [vmem:[%s197 + $0x8] sm:$0xf]
                %202 = vst [vmem:[%s198 + $0x4] sm:$0xf] %v201
              $region49: #{tpu_custom_call.1} parent=43 // loop_footer
                %s196 = sadd.s32 1, %s192
              $region50: #{tpu_custom_call.1} parent=43 // loop_footer_branch
                %191 = sbr.rel target = $region46
              $region51: #{tpu_custom_call.1} parent=43 // loop_exit
                _
            $region44: #{tpu_custom_call.1} parent=35 // pred_fallthru
              _
          $region36: #{tpu_custom_call.1} parent=31 // pred_fallthru
            _
          %226 = vnop
        $region32: #{tpu_custom_call.1} parent=27 // pred_fallthru
          _
      $region28: #{tpu_custom_call.1} parent=5 // pred_fallthru
        _
      %p227 = scmp.le.s32.totalorder 1, %s13
      %p228 = scmp.lt.s32.totalorder %s13, 3
      %p229 = pnand %p227, %p228
      %p230 = pneg %p229
      // Predicated region
      $region70: #{tpu_custom_call.1} parent=5 // pred_check
        _
      $region71: #{tpu_custom_call.1} parent=5 // pred_check_branch
        %232 = sbr.rel (%p229) target = $region73
      $region72: #{tpu_custom_call.1} parent=5 // pred_region
        %s233 = ssub.s32 %s13, 1
        %s234 = sand.u32 %s40, 1
        %s235 = sand.u32 %s40, 1
        %s236 = smul.addr %s235, 8
        %s237 = scalar_lea.vmem [#allocation2], %s236
        // Predicated region
        $region74: #{tpu_custom_call.1} parent=72 // pred_check
          %p238 = pneg %p53
        $region75: #{tpu_custom_call.1} parent=72 // pred_check_branch
          %240 = sbr.rel (%p238) target = $region77
        $region76: #{tpu_custom_call.1} parent=72 // pred_region
          _
        $region77: #{tpu_custom_call.1} parent=72 // pred_fallthru
          _
        %s241 = sand.u32 %s40, 1
        %s242 = sand.u32 %s40, 1
        %s243 = smul.addr %s242, 8
        %s244 = scalar_lea.vmem [#allocation2], %s243
        %p245 = pneg %p53
        %p246 = pneg %p50
        %p247 = pneg %p74
        %p248 = pneg %p71
        %p249 = pneg %p95
        %p250 = pneg %p92
        %p251 = pneg %p116
        %p252 = pneg %p113
        %p253 = pneg %p144
        %p254 = pneg %p141
        %s255 = sand.u32 %s131, 1
        %s256 = scalar_lea.sflag [#allocation4], %s255
        %s257 = sand.u32 %s131, 1
        %s258 = smul.addr %s257, 16
        %s259 = scalar_lea.vmem [#allocation3], %s258
        %s260 = smul.u32 2, %s22
        %s261 = smul.u32 2, %s22
        %v262 = vld [vmem:[%s1] sm:$0xf]
        %v263 = vld [vmem:[%s2] sm:$0xf]
        %v264 = vld [vmem:[%s3] sm:$0xff]
        %v265 = vld [vmem:[%s237] sm:$0xf]
        %267 = vset.pattern.permute.xlu0 0
        %268 = vperm.xlu0 %267, %v262
        %v269 = vpop.permute.xlu0 %268
        %v271 = vmul.f32 %v265, %v269
        %273 = vset.pattern.permute.xlu0 0
        %274 = vperm.xlu0 %273, %v263
        %v275 = vpop.permute.xlu0 %274
        %v277 = vadd.f32 %v271, %v275
        %v278 = vmax.f32 %v277, 0.0
        %280 = vset.pattern.permute.xlu0 0
        %281 = vperm.xlu0 %280, %v264
        %v282 = vpop.permute.xlu0 %281
        %v284 = vlaneseq
        %v285 = vshrl.u32 %v284, 7
        %v286 = vsub.s32 0, %v285
        %v287 = vrot.slane %v278, %v286
        %v288 = vmul.f32 %v282, %v287
        %289 = vset.pattern.permute.xlu0 1
        %290 = vperm.xlu0 %289, %v264
        %v291 = vpop.permute.xlu0 %290
        %v293 = vlaneseq
        %v294 = vshrl.u32 %v293, 7
        %v295 = vsub.s32 1, %v294
        %v296 = vrot.slane %v278, %v295
        %v297 = vmul.f32 %v291, %v296
        %v298 = vadd.f32 %v288, %v297
        %299 = vset.pattern.permute.xlu0 2
        %300 = vperm.xlu0 %299, %v264
        %v301 = vpop.permute.xlu0 %300
        %v303 = vlaneseq
        %v304 = vshrl.u32 %v303, 7
        %v305 = vsub.s32 2, %v304
        %v306 = vrot.slane %v278, %v305
        %v307 = vmul.f32 %v301, %v306
        %v308 = vadd.f32 %v298, %v307
        %309 = vset.pattern.permute.xlu0 3
        %310 = vperm.xlu0 %309, %v264
        %v311 = vpop.permute.xlu0 %310
        %v313 = vlaneseq
        %v314 = vshrl.u32 %v313, 7
        %v315 = vsub.s32 3, %v314
        %v316 = vrot.slane %v278, %v315
        %v317 = vmul.f32 %v311, %v316
        %v318 = vadd.f32 %v308, %v317
        %319 = vst [vmem:[%s259] sm:$0xff] %v318
        %s320 = scalar_lea.vmem %s237, 4 [#allocation2]
        %v321 = vld [vmem:[%s320] sm:$0xf]
        %v322 = vmul.f32 %v321, %v269
        %v323 = vadd.f32 %v322, %v275
        %v324 = vmax.f32 %v323, 0.0
        %v325 = vlaneseq
        %v326 = vshrl.u32 %v325, 7
        %v327 = vsub.s32 0, %v326
        %v328 = vrot.slane %v324, %v327
        %v329 = vmul.f32 %v282, %v328
        %v330 = vlaneseq
        %v331 = vshrl.u32 %v330, 7
        %v332 = vsub.s32 1, %v331
        %v333 = vrot.slane %v324, %v332
        %v334 = vmul.f32 %v291, %v333
        %v335 = vadd.f32 %v329, %v334
        %v336 = vlaneseq
        %v337 = vshrl.u32 %v336, 7
        %v338 = vsub.s32 2, %v337
        %v339 = vrot.slane %v324, %v338
        %v340 = vmul.f32 %v301, %v339
        %v341 = vadd.f32 %v335, %v340
        %v342 = vlaneseq
        %v343 = vshrl.u32 %v342, 7
        %v344 = vsub.s32 3, %v343
        %v345 = vrot.slane %v324, %v344
        %v346 = vmul.f32 %v311, %v345
        %v347 = vadd.f32 %v341, %v346
        %s348 = scalar_lea.vmem %s259, 8 [#allocation3]
        %349 = vst [vmem:[%s348] sm:$0xff] %v347
        %s350 = sand.u32 %s131, 1
        %s351 = scalar_lea.sflag [#allocation4], %s350
        %s352 = sand.u32 %s131, 1
        %s353 = smul.addr %s352, 16
        %s354 = scalar_lea.vmem [#allocation3], %s353
        // Predicated region
        $region78: #{tpu_custom_call.1} parent=72 // pred_check
          %p355 = pneg %p141
        $region79: #{tpu_custom_call.1} parent=72 // pred_check_branch
          %357 = sbr.rel (%p355) target = $region81
        $region80: #{tpu_custom_call.1} parent=72 // pred_region
          %s358 = smul.u32 2, %s22
          %s360 = ssub.s32 256, 256
          %361 = vsyncadd %s351, %s360
          %s362 = smul.addr %s358, 2
          %s363 = sadd.s32 %s23, %s362
          %s364 = smul.addr %s363, 128
          %s365 = scalar_lea.hbm %s4, %s364
          %s366 = sshll.u32 %s354, 4
          %s367 = int_to_ptr.vmem [resolvable:$true] %s366
          %372 = dma.vmem_to_hbm [thread:$0]  %s367, 256, %s365, %s351, 128, 256, 8
        $region81: #{tpu_custom_call.1} parent=72 // pred_fallthru
          _
      $region73: #{tpu_custom_call.1} parent=5 // pred_fallthru
        _
      %p373 = scmp.le.s32.totalorder 2, %s13
      // Predicated region
      $region82: #{tpu_custom_call.1} parent=5 // pred_check
        %p374 = pneg %p373
      $region83: #{tpu_custom_call.1} parent=5 // pred_check_branch
        %376 = sbr.rel (%p374) target = $region85
      $region84: #{tpu_custom_call.1} parent=5 // pred_region
        %s377 = ssub.s32 %s13, 2
        // Predicated region
        $region86: #{tpu_custom_call.1} parent=84 // pred_check
          %p378 = pneg %p147
        $region87: #{tpu_custom_call.1} parent=84 // pred_check_branch
          %380 = sbr.rel (%p378) target = $region89
        $region88: #{tpu_custom_call.1} parent=84 // pred_region
          %s381 = sand.u32 %s132, 1
          %s382 = scalar_lea.sflag [#allocation4], %s381
          %s383 = sand.u32 %s132, 1
          %s384 = smul.addr %s383, 16
          %s385 = scalar_lea.vmem [#allocation3], %s384
          %386 = dma.done %s382, 256
        $region89: #{tpu_custom_call.1} parent=84 // pred_fallthru
          _
      $region85: #{tpu_custom_call.1} parent=5 // pred_fallthru
        _
    $region6: #{tpu_custom_call.1} parent=1 // loop_footer
      %s17 = sadd.s32 1, %s13
    $region7: #{tpu_custom_call.1} parent=1 // loop_footer_branch
      %12 = sbr.rel target = $region3
    $region8: #{tpu_custom_call.1} parent=1 // loop_exit
      _
    %387 = vsyncpa [#allocation4], 1
    %s388 = scalar_lea.sflag [#allocation4], 1
    %389 = vsyncpa %s388, 1

</llo_original>
